<compile_context>
chip_gen: v7x
topology: tpu7x:2x2x1
jax: 0.10.0
libtpu: 0.0.40
codegen_flags: <defaults>
</compile_context>

<pallas_src>
import jax
import jax.numpy as jnp
from jax.experimental import pallas as pl
from jax.experimental.pallas import tpu as pltpu


TILE_ROWS = 256        # activation row tile (multiple of 8, fills MXU M)
K_PAD = 8              # input features padded 7 -> 8 (sublane aligned)
OUT_LANES = 128        # layer-3 output padded 2 -> 128 (lane-dense stores)


def mlp_kernel(x_ref, w1_ref, b1_ref, w2_ref, b2_ref, w3_ref, b3_ref, o_ref):
    # layer 1: Linear(8 -> 128) + ReLU   (K zero-padded, exact result)
    h1 = jnp.dot(x_ref[...], w1_ref[...], preferred_element_type=jnp.float32)
    h1 = jnp.maximum(h1 + b1_ref[...], 0.0)
    # layer 2: Linear(128 -> 64) + ReLU
    h2 = jnp.dot(h1, w2_ref[...], preferred_element_type=jnp.float32)
    h2 = jnp.maximum(h2 + b2_ref[...], 0.0)
    # layer 3: Linear(64 -> 128 padded) + ReLU  (lanes 2..127 are zeros)
    h3 = jnp.dot(h2, w3_ref[...], preferred_element_type=jnp.float32)
    h3 = jnp.maximum(h3 + b3_ref[...], 0.0)
    o_ref[...] = h3.astype(o_ref.dtype)


def mlp_pallas(x, w1, b1, w2, b2, w3, b3, *, tile_rows=TILE_ROWS):
    """x: (N, 7) flattened rows; weights [in, out]; biases [1, out]."""
    n, k = x.shape
    out_size = w3.shape[1]

    # --- wrapper-side layout padding (all zero-padded, numerically exact) ---
    # K: 7 -> 8
    x_p = jnp.pad(x, ((0, 0), (0, K_PAD - k)))
    w1_p = jnp.pad(w1, ((0, K_PAD - k), (0, 0)))
    # output lanes: 2 -> 128
    w3_p = jnp.pad(w3, ((0, 0), (0, OUT_LANES - out_size)))
    b3_p = jnp.pad(b3, ((0, 0), (0, OUT_LANES - out_size)))
    # rows: pad to a multiple of tile_rows
    num_tiles = pl.cdiv(n, tile_rows)
    n_pad = num_tiles * tile_rows
    x_p = jnp.pad(x_p, ((0, n_pad - n), (0, 0)))

    # weights/biases: full-array blocks, constant block index -> VMEM-resident
    def resident(shape):
        return pl.BlockSpec(shape, lambda i: (0, 0))

    out = pl.pallas_call(
        mlp_kernel,
        out_shape=jax.ShapeDtypeStruct((n_pad, OUT_LANES), jnp.float32),
        grid=(num_tiles,),
        in_specs=[
            pl.BlockSpec((tile_rows, K_PAD), lambda i: (i, 0)),   # x tile streams
            resident(w1_p.shape),
            resident(b1.shape),
            resident(w2.shape),
            resident(b2.shape),
            resident(w3_p.shape),
            resident(b3_p.shape),
        ],
        out_specs=pl.BlockSpec((tile_rows, OUT_LANES), lambda i: (i, 0)),
        compiler_params=pltpu.CompilerParams(
            dimension_semantics=("parallel",),   # shard grid over v7x's 2 TCs
        ),
    )(x_p, w1_p, b1, w2, b2, w3_p, b3_p)

    # drop the row padding and the lane padding
    return out[:n, :out_size]


def mlp_ref(x, w1, b1, w2, b2, w3, b3):
    h1 = jnp.maximum(x @ w1 + b1, 0.0)
    h2 = jnp.maximum(h1 @ w2 + b2, 0.0)
    return jnp.maximum(h2 @ w3 + b3, 0.0)


def init_linear(key, fan_in, fan_out):
    # deterministic stand-in for torch.nn.Linear default init:
    # U(-1/sqrt(fan_in), 1/sqrt(fan_in)) for both weight and bias.
    kw, kb = jax.random.split(key)
    bound = 1.0 / jnp.sqrt(float(fan_in))
    w = jax.random.uniform(kw, (fan_in, fan_out), jnp.float32, -bound, bound)
    b = jax.random.uniform(kb, (1, fan_out), jnp.float32, -bound, bound)
    return w, b


if __name__ == "__main__":
    # Shapes implied by the reference script: each stencil is 20 rows of
    # rotation-invariant features (11 - 4 = 7). Batch many stencils so the
    # kernel actually streams row tiles through the grid.
    num_stencils = 64
    stencil_size = 20
    input_size = 7
    hidden_size1 = 128
    hidden_size2 = 64
    output_size = 2

    key = jax.random.PRNGKey(0)
    kx, k1, k2, k3 = jax.random.split(key, 4)

    # batch of stencils -> flatten rows into the M dimension
    x_batched = jax.random.uniform(
        kx, (num_stencils, stencil_size, input_size), jnp.float32)
    x_flat = x_batched.reshape(num_stencils * stencil_size, input_size)

    w1, b1 = init_linear(k1, input_size, hidden_size1)
    w2, b2 = init_linear(k2, hidden_size1, hidden_size2)
    w3, b3 = init_linear(k3, hidden_size2, output_size)

    out = mlp_pallas(x_flat, w1, b1, w2, b2, w3, b3)
    out = jax.block_until_ready(out)

    ref = mlp_ref(x_flat, w1, b1, w2, b2, w3, b3)
    assert out.shape == (num_stencils * stencil_size, output_size)
    assert jnp.allclose(out, ref, atol=1e-5, rtol=1e-5), "mismatch vs reference"

    # per-stencil embedding G has shape (num_stencils, 20, 2)
    G = out.reshape(num_stencils, stencil_size, output_size)
    assert G.shape == (num_stencils, stencil_size, output_size)

    print("KERNEL_OK")
</pallas_src>

<mosaic_0001>
module attributes {stable_mosaic.version = 11 : i64} {
  func.func @mlp_kernel(%arg0: i32, %arg1: memref<256x8xf32, #tpu.memory_space<vmem>>, %arg2: memref<8x128xf32, #tpu.memory_space<vmem>>, %arg3: memref<1x128xf32, #tpu.memory_space<vmem>>, %arg4: memref<128x64xf32, #tpu.memory_space<vmem>>, %arg5: memref<1x64xf32, #tpu.memory_space<vmem>>, %arg6: memref<64x128xf32, #tpu.memory_space<vmem>>, %arg7: memref<1x128xf32, #tpu.memory_space<vmem>>, %arg8: memref<256x128xf32, #tpu.memory_space<vmem>>) attributes {dimension_semantics = [#tpu.dimension_semantics<parallel>], iteration_bounds = array<i64: 5>, scalar_prefetch = 0 : i64, scratch_operands = 0 : i64, tpu.core_type = #tpu.core_type<tc>, window_params = [{transform_indices = @transform_0, window_bounds = array<i64: 256, 8>}, {pipeline_mode = #tpu.pipeline_mode<synchronous>, transform_indices = @transform_1, window_bounds = array<i64: 8, 128>}, {pipeline_mode = #tpu.pipeline_mode<synchronous>, transform_indices = @transform_2, window_bounds = array<i64: 1, 128>}, {pipeline_mode = #tpu.pipeline_mode<synchronous>, transform_indices = @transform_3, window_bounds = array<i64: 128, 64>}, {pipeline_mode = #tpu.pipeline_mode<synchronous>, transform_indices = @transform_4, window_bounds = array<i64: 1, 64>}, {pipeline_mode = #tpu.pipeline_mode<synchronous>, transform_indices = @transform_5, window_bounds = array<i64: 64, 128>}, {pipeline_mode = #tpu.pipeline_mode<synchronous>, transform_indices = @transform_6, window_bounds = array<i64: 1, 128>}, {transform_indices = @transform_7, window_bounds = array<i64: 256, 128>}]} {
    %c0 = arith.constant 0 : index
    %c0_0 = arith.constant 0 : index
    %0 = vector.load %arg1[%c0, %c0_0] : memref<256x8xf32, #tpu.memory_space<vmem>>, vector<256x8xf32>
    %c0_1 = arith.constant 0 : index
    %c0_2 = arith.constant 0 : index
    %1 = vector.load %arg2[%c0_1, %c0_2] : memref<8x128xf32, #tpu.memory_space<vmem>>, vector<8x128xf32>
    %cst = arith.constant dense<0.000000e+00> : vector<256x128xf32>
    %2 = tpu.matmul %0, %1, %cst {dimension_numbers = #tpu.dot_dimension_numbers<[1], [0], [0], [1], [0, 0, 1, 1], [], []>} : vector<256x8xf32>, vector<8x128xf32>, vector<256x128xf32> -> vector<256x128xf32>
    %c0_3 = arith.constant 0 : index
    %c0_4 = arith.constant 0 : index
    %3 = vector.load %arg3[%c0_3, %c0_4] : memref<1x128xf32, #tpu.memory_space<vmem>>, vector<1x128xf32>
    %4 = vector.broadcast %3 : vector<1x128xf32> to vector<256x128xf32>
    %5 = arith.addf %2, %4 : vector<256x128xf32>
    %cst_5 = arith.constant 0.000000e+00 : f32
    %6 = vector.broadcast %cst_5 : f32 to vector<256x128xf32>
    %7 = arith.maximumf %5, %6 : vector<256x128xf32>
    %c0_6 = arith.constant 0 : index
    %c0_7 = arith.constant 0 : index
    %8 = vector.load %arg4[%c0_6, %c0_7] : memref<128x64xf32, #tpu.memory_space<vmem>>, vector<128x64xf32>
    %cst_8 = arith.constant dense<0.000000e+00> : vector<256x64xf32>
    %9 = tpu.matmul %7, %8, %cst_8 {dimension_numbers = #tpu.dot_dimension_numbers<[1], [0], [0], [1], [0, 0, 1, 1], [], []>} : vector<256x128xf32>, vector<128x64xf32>, vector<256x64xf32> -> vector<256x64xf32>
    %c0_9 = arith.constant 0 : index
    %c0_10 = arith.constant 0 : index
    %10 = vector.load %arg5[%c0_9, %c0_10] : memref<1x64xf32, #tpu.memory_space<vmem>>, vector<1x64xf32>
    %11 = vector.broadcast %10 : vector<1x64xf32> to vector<256x64xf32>
    %12 = arith.addf %9, %11 : vector<256x64xf32>
    %cst_11 = arith.constant 0.000000e+00 : f32
    %13 = vector.broadcast %cst_11 : f32 to vector<256x64xf32>
    %14 = arith.maximumf %12, %13 : vector<256x64xf32>
    %c0_12 = arith.constant 0 : index
    %c0_13 = arith.constant 0 : index
    %15 = vector.load %arg6[%c0_12, %c0_13] : memref<64x128xf32, #tpu.memory_space<vmem>>, vector<64x128xf32>
    %cst_14 = arith.constant dense<0.000000e+00> : vector<256x128xf32>
    %16 = tpu.matmul %14, %15, %cst_14 {dimension_numbers = #tpu.dot_dimension_numbers<[1], [0], [0], [1], [0, 0, 1, 1], [], []>} : vector<256x64xf32>, vector<64x128xf32>, vector<256x128xf32> -> vector<256x128xf32>
    %c0_15 = arith.constant 0 : index
    %c0_16 = arith.constant 0 : index
    %17 = vector.load %arg7[%c0_15, %c0_16] : memref<1x128xf32, #tpu.memory_space<vmem>>, vector<1x128xf32>
    %18 = vector.broadcast %17 : vector<1x128xf32> to vector<256x128xf32>
    %19 = arith.addf %16, %18 : vector<256x128xf32>
    %cst_17 = arith.constant 0.000000e+00 : f32
    %20 = vector.broadcast %cst_17 : f32 to vector<256x128xf32>
    %21 = arith.maximumf %19, %20 : vector<256x128xf32>
    %c0_18 = arith.constant 0 : index
    %c0_19 = arith.constant 0 : index
    %22 = vector.load %arg8[%c0_18, %c0_19] : memref<256x128xf32, #tpu.memory_space<vmem>>, vector<256x128xf32>
    tpu.vector_store %arg8[%c0_18, %c0_19], %21 {strides = array<i32>} : memref<256x128xf32, #tpu.memory_space<vmem>>, vector<256x128xf32>,
    return
  }
  func.func @transform_0(%arg0: i32) -> (i32, i32) {
    %c0_i32 = arith.constant 0 : i32
    %c0_i32_0 = arith.constant 0 : i32
    return %arg0, %c0_i32 : i32, i32
  }
  func.func @transform_1(%arg0: i32) -> (i32, i32) {
    %c0_i32 = arith.constant 0 : i32
    %c0_i32_0 = arith.constant 0 : i32
    %c0_i32_1 = arith.constant 0 : i32
    return %c0_i32, %c0_i32_0 : i32, i32
  }
  func.func @transform_2(%arg0: i32) -> (i32, i32) {
    %c0_i32 = arith.constant 0 : i32
    %c0_i32_0 = arith.constant 0 : i32
    %c0_i32_1 = arith.constant 0 : i32
    return %c0_i32, %c0_i32_0 : i32, i32
  }
  func.func @transform_3(%arg0: i32) -> (i32, i32) {
    %c0_i32 = arith.constant 0 : i32
    %c0_i32_0 = arith.constant 0 : i32
    %c0_i32_1 = arith.constant 0 : i32
    return %c0_i32, %c0_i32_0 : i32, i32
  }
  func.func @transform_4(%arg0: i32) -> (i32, i32) {
    %c0_i32 = arith.constant 0 : i32
    %c0_i32_0 = arith.constant 0 : i32
    %c0_i32_1 = arith.constant 0 : i32
    return %c0_i32, %c0_i32_0 : i32, i32
  }
  func.func @transform_5(%arg0: i32) -> (i32, i32) {
    %c0_i32 = arith.constant 0 : i32
    %c0_i32_0 = arith.constant 0 : i32
    %c0_i32_1 = arith.constant 0 : i32
    return %c0_i32, %c0_i32_0 : i32, i32
  }
  func.func @transform_6(%arg0: i32) -> (i32, i32) {
    %c0_i32 = arith.constant 0 : i32
    %c0_i32_0 = arith.constant 0 : i32
    %c0_i32_1 = arith.constant 0 : i32
    return %c0_i32, %c0_i32_0 : i32, i32
  }
  func.func @transform_7(%arg0: i32) -> (i32, i32) {
    %c0_i32 = arith.constant 0 : i32
    %c0_i32_0 = arith.constant 0 : i32
    return %arg0, %c0_i32 : i32, i32
  }
}

</mosaic_0001>

<llo_original>
// kernel: tpu_custom_call.1
$region0: #{tpu_custom_call.1}
  #allocation0 [shape = 'u32[]', space=smem, size = 0x4, offset = 0x4, fixed_abs, tag = 'smem constant byte address 0x4 - core index']
  #allocation1 [shape = 'u32[144,128]{1,0:T(1,128)}', space=vmem, size = 0x12000, scoped, tag = 'internal scratch']
  %s0 = inlined_call_operand.vmem [shape: f32[1280,8], index: 0, kind: input, shape index: {}]
  %s1 = inlined_call_operand.vmem [shape: f32[8,128], index: 1, kind: input, shape index: {}]
  %s2 = inlined_call_operand.vmem [shape: f32[1,128], index: 2, kind: input, shape index: {}]
  %s3 = inlined_call_operand.vmem [shape: f32[128,64], index: 3, kind: input, shape index: {}]
  %s4 = inlined_call_operand.vmem [shape: f32[1,64], index: 4, kind: input, shape index: {}]
  %s5 = inlined_call_operand.vmem [shape: f32[64,128], index: 5, kind: input, shape index: {}]
  %s6 = inlined_call_operand.vmem [shape: f32[1,128], index: 6, kind: input, shape index: {}]
  %s7 = inlined_call_operand.hbm [shape: f32[1280,128], index: 7, kind: output, shape index: {}]
  %s8 = sld [smem:[#allocation0]]
  $region61: #{tpu_custom_call.1} parent=0
    _
  %s10 = ssub.s32 1, %s8
  %s11 = scalar_select 0, %s10, %s8
  $region1: #{tpu_custom_call.1} parent=0
    #allocation2 [shape = 'u8[262144]{0}', space=vmem, size = 0x40000, scoped, tag = 'output window, operand 0']
    #allocation3 [shape = 's32[2]{0}', space=sflag, size = 0x8, scoped, tag = 'scoped memory for tpu_custom_call.1']
    %12 = vsyncpa [#allocation3], 0
    %s13 = scalar_lea.sflag [#allocation3], 1
    %14 = vsyncpa %s13, 0
    loop: start=0, step=1, limit=7
    $region2: #{tpu_custom_call.1} parent=1 // loop_pre_header
      _
    $region3: #{tpu_custom_call.1} parent=1 // loop_header
      %s16 = sphi 0, %s20
      %p17 = scmp.ge.s32.totalorder %s16, 7
      %s26 = sphi 0, %s28
      %s29 = sphi 0, %s26
      %s30 = sphi 0, %s29
      %s46 = sphi 0, %s30
      %s50 = sphi 0, %s50
      %s52 = sphi 0, %s50
      %s53 = sphi 0, %s52
      %s67 = sphi 0, %s53
      %s71 = sphi 0, %s71
      %s73 = sphi 0, %s71
      %s74 = sphi 0, %s73
      %s88 = sphi 0, %s74
      %s92 = sphi 0, %s92
      %s94 = sphi 0, %s92
      %s95 = sphi 0, %s94
      %s109 = sphi 0, %s95
      %s113 = sphi 0, %s113
      %s115 = sphi 0, %s113
      %s116 = sphi 0, %s115
      %s130 = sphi 0, %s116
      %s134 = sphi 0, %s134
      %s136 = sphi 0, %s134
      %s137 = sphi 0, %s136
      %s151 = sphi 0, %s137
      %s155 = sphi 0, %s155
      %s157 = sphi 0, %s155
      %s158 = sphi 0, %s157
      %s172 = sphi 0, %s158
      %s178 = sphi 0, %s180
      %s181 = sphi 0, %s178
      %s182 = sphi 0, %s181
      %s198 = sphi 0, %s182
    $region4: #{tpu_custom_call.1} parent=1 // loop_header_branch
      %19 = sbr.rel (%p17) target = $region8
    $region5: #{tpu_custom_call.1} parent=1 // loop_body
      %s21 = ssub.s32 %s16, 1
      %s22 = ssub.s32 %s16, 2
      %s23 = sadd.s32 %s16, 1
      %s24 = ssub.s32 %s16, %s23
      %p25 = scmp.eq.s32.totalorder %s24, 0
      %s27 = sadd.s32 %s26, 1
      %s28 = scalar_select %p25, %s26, %s27
      %p31 = pneg %p25
      %p32 = scmp.eq.s32.totalorder %s16, 4
      %p33 = por %p31, %p32
      %p34 = scmp.ne.s32.totalorder %s26, %s29
      %p35 = scmp.eq.s32.totalorder %s16, 0
      %p36 = por %p34, %p35
      %p37 = scmp.ne.s32.totalorder %s26, %s29
      %p38 = scmp.eq.s32.totalorder %s21, 4
      %p39 = por %p37, %p38
      %p40 = scmp.ne.s32.totalorder %s29, %s30
      %p41 = scmp.eq.s32.totalorder %s21, 0
      %p42 = por %p40, %p41
      %p43 = scmp.ne.s32.totalorder %s29, %s30
      %p44 = scmp.eq.s32.totalorder %s22, 4
      %p45 = por %p43, %p44
      %p47 = scmp.ne.s32.totalorder %s30, %s46
      %p48 = scmp.eq.s32.totalorder %s22, 0
      %p49 = por %p47, %p48
      %s51 = sadd.s32 %s50, 1
      %p54 = scmp.eq.s32.totalorder %s16, 4
      %p55 = scmp.ne.s32.totalorder %s50, %s52
      %p56 = scmp.eq.s32.totalorder %s16, 0
      %p57 = por %p55, %p56
      %p58 = scmp.ne.s32.totalorder %s50, %s52
      %p59 = scmp.eq.s32.totalorder %s21, 4
      %p60 = por %p58, %p59
      %p61 = scmp.ne.s32.totalorder %s52, %s53
      %p62 = scmp.eq.s32.totalorder %s21, 0
      %p63 = por %p61, %p62
      %p64 = scmp.ne.s32.totalorder %s52, %s53
      %p65 = scmp.eq.s32.totalorder %s22, 4
      %p66 = por %p64, %p65
      %p68 = scmp.ne.s32.totalorder %s53, %s67
      %p69 = scmp.eq.s32.totalorder %s22, 0
      %p70 = por %p68, %p69
      %s72 = sadd.s32 %s71, 1
      %p75 = scmp.eq.s32.totalorder %s16, 4
      %p76 = scmp.ne.s32.totalorder %s71, %s73
      %p77 = scmp.eq.s32.totalorder %s16, 0
      %p78 = por %p76, %p77
      %p79 = scmp.ne.s32.totalorder %s71, %s73
      %p80 = scmp.eq.s32.totalorder %s21, 4
      %p81 = por %p79, %p80
      %p82 = scmp.ne.s32.totalorder %s73, %s74
      %p83 = scmp.eq.s32.totalorder %s21, 0
      %p84 = por %p82, %p83
      %p85 = scmp.ne.s32.totalorder %s73, %s74
      %p86 = scmp.eq.s32.totalorder %s22, 4
      %p87 = por %p85, %p86
      %p89 = scmp.ne.s32.totalorder %s74, %s88
      %p90 = scmp.eq.s32.totalorder %s22, 0
      %p91 = por %p89, %p90
      %s93 = sadd.s32 %s92, 1
      %p96 = scmp.eq.s32.totalorder %s16, 4
      %p97 = scmp.ne.s32.totalorder %s92, %s94
      %p98 = scmp.eq.s32.totalorder %s16, 0
      %p99 = por %p97, %p98
      %p100 = scmp.ne.s32.totalorder %s92, %s94
      %p101 = scmp.eq.s32.totalorder %s21, 4
      %p102 = por %p100, %p101
      %p103 = scmp.ne.s32.totalorder %s94, %s95
      %p104 = scmp.eq.s32.totalorder %s21, 0
      %p105 = por %p103, %p104
      %p106 = scmp.ne.s32.totalorder %s94, %s95
      %p107 = scmp.eq.s32.totalorder %s22, 4
      %p108 = por %p106, %p107
      %p110 = scmp.ne.s32.totalorder %s95, %s109
      %p111 = scmp.eq.s32.totalorder %s22, 0
      %p112 = por %p110, %p111
      %s114 = sadd.s32 %s113, 1
      %p117 = scmp.eq.s32.totalorder %s16, 4
      %p118 = scmp.ne.s32.totalorder %s113, %s115
      %p119 = scmp.eq.s32.totalorder %s16, 0
      %p120 = por %p118, %p119
      %p121 = scmp.ne.s32.totalorder %s113, %s115
      %p122 = scmp.eq.s32.totalorder %s21, 4
      %p123 = por %p121, %p122
      %p124 = scmp.ne.s32.totalorder %s115, %s116
      %p125 = scmp.eq.s32.totalorder %s21, 0
      %p126 = por %p124, %p125
      %p127 = scmp.ne.s32.totalorder %s115, %s116
      %p128 = scmp.eq.s32.totalorder %s22, 4
      %p129 = por %p127, %p128
      %p131 = scmp.ne.s32.totalorder %s116, %s130
      %p132 = scmp.eq.s32.totalorder %s22, 0
      %p133 = por %p131, %p132
      %s135 = sadd.s32 %s134, 1
      %p138 = scmp.eq.s32.totalorder %s16, 4
      %p139 = scmp.ne.s32.totalorder %s134, %s136
      %p140 = scmp.eq.s32.totalorder %s16, 0
      %p141 = por %p139, %p140
      %p142 = scmp.ne.s32.totalorder %s134, %s136
      %p143 = scmp.eq.s32.totalorder %s21, 4
      %p144 = por %p142, %p143
      %p145 = scmp.ne.s32.totalorder %s136, %s137
      %p146 = scmp.eq.s32.totalorder %s21, 0
      %p147 = por %p145, %p146
      %p148 = scmp.ne.s32.totalorder %s136, %s137
      %p149 = scmp.eq.s32.totalorder %s22, 4
      %p150 = por %p148, %p149
      %p152 = scmp.ne.s32.totalorder %s137, %s151
      %p153 = scmp.eq.s32.totalorder %s22, 0
      %p154 = por %p152, %p153
      %s156 = sadd.s32 %s155, 1
      %p159 = scmp.eq.s32.totalorder %s16, 4
      %p160 = scmp.ne.s32.totalorder %s155, %s157
      %p161 = scmp.eq.s32.totalorder %s16, 0
      %p162 = por %p160, %p161
      %p163 = scmp.ne.s32.totalorder %s155, %s157
      %p164 = scmp.eq.s32.totalorder %s21, 4
      %p165 = por %p163, %p164
      %p166 = scmp.ne.s32.totalorder %s157, %s158
      %p167 = scmp.eq.s32.totalorder %s21, 0
      %p168 = por %p166, %p167
      %p169 = scmp.ne.s32.totalorder %s157, %s158
      %p170 = scmp.eq.s32.totalorder %s22, 4
      %p171 = por %p169, %p170
      %p173 = scmp.ne.s32.totalorder %s158, %s172
      %p174 = scmp.eq.s32.totalorder %s22, 0
      %p175 = por %p173, %p174
      %s176 = ssub.s32 %s16, %s23
      %p177 = scmp.eq.s32.totalorder %s176, 0
      %s179 = sadd.s32 %s178, 1
      %s180 = scalar_select %p177, %s178, %s179
      %p183 = pneg %p177
      %p184 = scmp.eq.s32.totalorder %s16, 4
      %p185 = por %p183, %p184
      %p186 = scmp.ne.s32.totalorder %s178, %s181
      %p187 = scmp.eq.s32.totalorder %s16, 0
      %p188 = por %p186, %p187
      %p189 = scmp.ne.s32.totalorder %s178, %s181
      %p190 = scmp.eq.s32.totalorder %s21, 4
      %p191 = por %p189, %p190
      %p192 = scmp.ne.s32.totalorder %s181, %s182
      %p193 = scmp.eq.s32.totalorder %s21, 0
      %p194 = por %p192, %p193
      %p195 = scmp.ne.s32.totalorder %s181, %s182
      %p196 = scmp.eq.s32.totalorder %s22, 4
      %p197 = por %p195, %p196
      %p199 = scmp.ne.s32.totalorder %s182, %s198
      %p200 = scmp.eq.s32.totalorder %s22, 0
      %p201 = por %p199, %p200
      %p202 = scmp.le.s32.totalorder 1, %s16
      %p203 = scmp.lt.s32.totalorder %s16, 6
      %p204 = pnand %p202, %p203
      %p205 = pneg %p204
      // Predicated region
      $region9: #{tpu_custom_call.1} parent=5 // pred_check
        _
      $region10: #{tpu_custom_call.1} parent=5 // pred_check_branch
        %207 = sbr.rel (%p204) target = $region12
      $region11: #{tpu_custom_call.1} parent=5 // pred_region
        %s208 = ssub.s32 %s16, 1
        // Predicated region
        $region13: #{tpu_custom_call.1} parent=11 // pred_check
          %p209 = pneg %p63
        $region14: #{tpu_custom_call.1} parent=11 // pred_check_branch
          %211 = sbr.rel (%p209) target = $region16
        $region15: #{tpu_custom_call.1} parent=11 // pred_region
          _
        $region16: #{tpu_custom_call.1} parent=11 // pred_fallthru
          _
        // Predicated region
        $region17: #{tpu_custom_call.1} parent=11 // pred_check
          %p212 = pneg %p84
        $region18: #{tpu_custom_call.1} parent=11 // pred_check_branch
          %214 = sbr.rel (%p212) target = $region20
        $region19: #{tpu_custom_call.1} parent=11 // pred_region
          _
        $region20: #{tpu_custom_call.1} parent=11 // pred_fallthru
          _
        // Predicated region
        $region21: #{tpu_custom_call.1} parent=11 // pred_check
          %p215 = pneg %p105
        $region22: #{tpu_custom_call.1} parent=11 // pred_check_branch
          %217 = sbr.rel (%p215) target = $region24
        $region23: #{tpu_custom_call.1} parent=11 // pred_region
          _
        $region24: #{tpu_custom_call.1} parent=11 // pred_fallthru
          _
        // Predicated region
        $region25: #{tpu_custom_call.1} parent=11 // pred_check
          %p218 = pneg %p126
        $region26: #{tpu_custom_call.1} parent=11 // pred_check_branch
          %220 = sbr.rel (%p218) target = $region28
        $region27: #{tpu_custom_call.1} parent=11 // pred_region
          _
        $region28: #{tpu_custom_call.1} parent=11 // pred_fallthru
          _
        // Predicated region
        $region29: #{tpu_custom_call.1} parent=11 // pred_check
          %p221 = pneg %p147
        $region30: #{tpu_custom_call.1} parent=11 // pred_check_branch
          %223 = sbr.rel (%p221) target = $region32
        $region31: #{tpu_custom_call.1} parent=11 // pred_region
          _
        $region32: #{tpu_custom_call.1} parent=11 // pred_fallthru
          _
        // Predicated region
        $region33: #{tpu_custom_call.1} parent=11 // pred_check
          %p224 = pneg %p168
        $region34: #{tpu_custom_call.1} parent=11 // pred_check_branch
          %226 = sbr.rel (%p224) target = $region36
        $region35: #{tpu_custom_call.1} parent=11 // pred_region
          _
        $region36: #{tpu_custom_call.1} parent=11 // pred_fallthru
          _
      $region12: #{tpu_custom_call.1} parent=5 // pred_fallthru
        _
      %p227 = scmp.lt.s32.totalorder %s16, 5
      // Predicated region
      $region37: #{tpu_custom_call.1} parent=5 // pred_check
        %p228 = pneg %p227
      $region38: #{tpu_custom_call.1} parent=5 // pred_check_branch
        %230 = sbr.rel (%p228) target = $region40
      $region39: #{tpu_custom_call.1} parent=5 // pred_region
        // Predicated region
        $region41: #{tpu_custom_call.1} parent=39 // pred_check
          %p231 = pneg %p36
        $region42: #{tpu_custom_call.1} parent=39 // pred_check_branch
          %233 = sbr.rel (%p231) target = $region44
        $region43: #{tpu_custom_call.1} parent=39 // pred_region
          %s234 = smul.u32 32, %s16
          %p235 = scmp.lt.s32.totalorder %s234, 159
          %s236 = scalar_select %p235, %s234, 159
          %s237 = smul.addr %s236, 8
          %s238 = scalar_lea.vmem %s0, %s237
          %s239 = smul.u32 32, %s16
        $region44: #{tpu_custom_call.1} parent=39 // pred_fallthru
          _
      $region40: #{tpu_custom_call.1} parent=5 // pred_fallthru
        _
      %p240 = scmp.le.s32.totalorder 1, %s16
      %p241 = scmp.lt.s32.totalorder %s16, 6
      %p242 = pnand %p240, %p241
      %p243 = pneg %p242
      // Predicated region
      $region45: #{tpu_custom_call.1} parent=5 // pred_check
        _
      $region46: #{tpu_custom_call.1} parent=5 // pred_check_branch
        %245 = sbr.rel (%p242) target = $region48
      $region47: #{tpu_custom_call.1} parent=5 // pred_region
        %s246 = ssub.s32 %s16, 1
        %s247 = smul.u32 32, %s21
        %p248 = scmp.lt.s32.totalorder %s247, 159
        %s249 = scalar_select %p248, %s247, 159
        %s250 = smul.addr %s249, 8
        %s251 = scalar_lea.vmem %s0, %s250
        %p252 = pneg %p42
        %p253 = pneg %p39
        %p254 = pneg %p63
        %p255 = pneg %p60
        %p256 = pneg %p84
        %p257 = pneg %p81
        %p258 = pneg %p105
        %p259 = pneg %p102
        %p260 = pneg %p126
        %p261 = pneg %p123
        %p262 = pneg %p147
        %p263 = pneg %p144
        %p264 = pneg %p168
        %p265 = pneg %p165
        %p266 = pneg %p194
        %p267 = pneg %p191
        %s268 = sand.u32 %s181, 1
        %s269 = scalar_lea.sflag [#allocation3], %s268
        %s270 = sand.u32 %s181, 1
        %s271 = smul.addr %s270, 256
        %s272 = scalar_lea.vmem [#allocation2], %s271
        %s273 = smul.u32 32, %s21
        %p274 = scmp.lt.s32.totalorder %s273, 159
        %s275 = scalar_select %p274, %s273, 159
        %s276 = smul.addr %s275, 8
        %s277 = scalar_lea.vmem %s0, %s276
        %s278 = smul.u32 32, %s21
        %s279 = smul.u32 32, %s21
        %v280 = vld [vmem:[%s277] sm:$0xff]
        %v281 = vld [vmem:[%s277 + $0x8] sm:$0xff]
        %v282 = vld [vmem:[%s277 + $0x10] sm:$0xff]
        %v283 = vld [vmem:[%s277 + $0x18] sm:$0xff]
        %v284 = vld [vmem:[%s277 + $0x20] sm:$0xff]
        %v285 = vld [vmem:[%s277 + $0x28] sm:$0xff]
        %v286 = vld [vmem:[%s277 + $0x30] sm:$0xff]
        %v287 = vld [vmem:[%s277 + $0x38] sm:$0xff]
        %v288 = vld [vmem:[%s277 + $0x40] sm:$0xff]
        %v289 = vld [vmem:[%s277 + $0x48] sm:$0xff]
        %v290 = vld [vmem:[%s277 + $0x50] sm:$0xff]
        %v291 = vld [vmem:[%s277 + $0x58] sm:$0xff]
        %v292 = vld [vmem:[%s277 + $0x60] sm:$0xff]
        %v293 = vld [vmem:[%s277 + $0x68] sm:$0xff]
        %v294 = vld [vmem:[%s277 + $0x70] sm:$0xff]
        %v295 = vld [vmem:[%s277 + $0x78] sm:$0xff]
        %v296 = vld [vmem:[%s277 + $0x80] sm:$0xff]
        %v297 = vld [vmem:[%s277 + $0x88] sm:$0xff]
        %v298 = vld [vmem:[%s277 + $0x90] sm:$0xff]
        %v299 = vld [vmem:[%s277 + $0x98] sm:$0xff]
        %v300 = vld [vmem:[%s277 + $0xa0] sm:$0xff]
        %v301 = vld [vmem:[%s277 + $0xa8] sm:$0xff]
        %v302 = vld [vmem:[%s277 + $0xb0] sm:$0xff]
        %v303 = vld [vmem:[%s277 + $0xb8] sm:$0xff]
        %v304 = vld [vmem:[%s277 + $0xc0] sm:$0xff]
        %v305 = vld [vmem:[%s277 + $0xc8] sm:$0xff]
        %v306 = vld [vmem:[%s277 + $0xd0] sm:$0xff]
        %v307 = vld [vmem:[%s277 + $0xd8] sm:$0xff]
        %v308 = vld [vmem:[%s277 + $0xe0] sm:$0xff]
        %v309 = vld [vmem:[%s277 + $0xe8] sm:$0xff]
        %v310 = vld [vmem:[%s277 + $0xf0] sm:$0xff]
        %v311 = vld [vmem:[%s277 + $0xf8] sm:$0xff]
        %v312 = vld [vmem:[%s1] sm:$0xff]
        %v313 = vld [vmem:[%s2] sm:$0x1]
        %v315 = vlaneseq
        %v316 = vshrl.u32 %v315, 7
        %v317 = vsub.s32 0, %v316
        %v318 = vrot.slane %v313, %v317
        %vm320 = vcmask 64512
        %v322 = vsel %vm320, %v280, 0
        %v325 = vsel %vm320, %v281, 0
        %v328 = vsel %vm320, %v282, 0
        %v331 = vsel %vm320, %v283, 0
        %v334 = vsel %vm320, %v284, 0
        %v337 = vsel %vm320, %v285, 0
        %v340 = vsel %vm320, %v286, 0
        %v343 = vsel %vm320, %v287, 0
        %v346 = vsel %vm320, %v288, 0
        %v349 = vsel %vm320, %v289, 0
        %v352 = vsel %vm320, %v290, 0
        %v355 = vsel %vm320, %v291, 0
        %v358 = vsel %vm320, %v292, 0
        %v361 = vsel %vm320, %v293, 0
        %v364 = vsel %vm320, %v294, 0
        %v367 = vsel %vm320, %v295, 0
        %v370 = vsel %vm320, %v296, 0
        %v373 = vsel %vm320, %v297, 0
        %v376 = vsel %vm320, %v298, 0
        %v379 = vsel %vm320, %v299, 0
        %v382 = vsel %vm320, %v300, 0
        %v385 = vsel %vm320, %v301, 0
        %v388 = vsel %vm320, %v302, 0
        %v391 = vsel %vm320, %v303, 0
        %v394 = vsel %vm320, %v304, 0
        %v397 = vsel %vm320, %v305, 0
        %v400 = vsel %vm320, %v306, 0
        %v403 = vsel %vm320, %v307, 0
        %v406 = vsel %vm320, %v308, 0
        %v409 = vsel %vm320, %v309, 0
        %v412 = vsel %vm320, %v310, 0
        %v415 = vsel %vm320, %v311, 0
        %417 = vmatprep.subr.mxu0 0.0
        %418 = vmatpush1.msra.mxu0 %v312
        %419 = vmatprep.subr.mxu0 0.0
        %420 = vmatpush1.msra.mxu0 0.0
        %421 = vmatprep.subr.mxu0 0.0
        %422 = vmatpush1.msra.mxu0 0.0
        %423 = vmatprep.subr.mxu0 0.0
        %424 = vmatpush1.msra.mxu0 0.0
        %425 = vmatprep.subr.mxu0 0.0
        %426 = vmatpush1.msra.mxu0 0.0
        %427 = vmatprep.subr.mxu0 0.0
        %428 = vmatpush1.msra.mxu0 0.0
        %429 = vmatprep.subr.mxu0 0.0
        %430 = vmatpush1.msra.mxu0 0.0
        %431 = vmatprep.subr.mxu0 0.0
        %432 = vmatpush1.msra.mxu0 0.0
        %433 = vmatprep.subr.mxu0 0.0
        %434 = vmatpush1.msra.mxu0 0.0
        %435 = vmatprep.subr.mxu0 0.0
        %436 = vmatpush1.msra.mxu0 0.0
        %437 = vmatprep.subr.mxu0 0.0
        %438 = vmatpush1.msra.mxu0 0.0
        %439 = vmatprep.subr.mxu0 0.0
        %440 = vmatpush1.msra.mxu0 0.0
        %441 = vmatprep.subr.mxu0 0.0
        %442 = vmatpush1.msra.mxu0 0.0
        %443 = vmatprep.subr.mxu0 0.0
        %444 = vmatpush1.msra.mxu0 0.0
        %445 = vmatprep.subr.mxu0 0.0
        %446 = vmatpush1.msra.mxu0 0.0
        %447 = vmatprep.subr.mxu0 0.0
        %448 = vmatpush1.msra.mxu0 0.0
        %449 = vmatprep.subr.mxu0 0.0
        %450 = vmatpush1.msra.mxu0 0.0
        %451 = vmatprep.subr.mxu0 0.0
        %452 = vmatpush1.msra.mxu0 0.0
        %453 = vmatprep.subr.mxu0 0.0
        %454 = vmatpush1.msra.mxu0 0.0
        %455 = vmatprep.subr.mxu0 0.0
        %456 = vmatpush1.msra.mxu0 0.0
        %457 = vmatprep.subr.mxu0 0.0
        %458 = vmatpush1.msra.mxu0 0.0
        %459 = vmatprep.subr.mxu0 0.0
        %460 = vmatpush1.msra.mxu0 0.0
        %461 = vmatprep.subr.mxu0 0.0
        %462 = vmatpush1.msra.mxu0 0.0
        %463 = vmatprep.subr.mxu0 0.0
        %464 = vmatpush1.msra.mxu0 0.0
        %465 = vmatprep.subr.mxu0 0.0
        %466 = vmatpush1.msra.mxu0 0.0
        %467 = vmatprep.subr.mxu0 0.0
        %468 = vmatpush1.msra.mxu0 0.0
        %469 = vmatprep.subr.mxu0 0.0
        %470 = vmatpush1.msra.mxu0 0.0
        %471 = vmatprep.subr.mxu0 0.0
        %472 = vmatpush1.msra.mxu0 0.0
        %473 = vmatprep.subr.mxu0 0.0
        %474 = vmatpush1.msra.mxu0 0.0
        %475 = vmatprep.subr.mxu0 0.0
        %476 = vmatpush1.msra.mxu0 0.0
        %477 = vmatprep.subr.mxu0 0.0
        %478 = vmatpush1.msra.mxu0 0.0
        %479 = vmatprep.subr.mxu0 0.0
        %480 = vmatpush1.msra.mxu0 0.0
        %481 = vmatprep.mubr.f32.mxu0 0.0
        %482 = vmatmul.mubr.f32.gmra.mrb[0].mxu0 %v322
        %v483 = vpop.f32.mrb[0].mxu0
        %v484 = vadd.f32 %v318, %v483
        %v485 = vpop.f32.mrb[0].mxu0
        %486 = vmatprep.mubr.f32.mxu0 0.0
        %487 = vmatmul.mubr.f32.gmra.mrb[0].mxu0 %v325
        %v488 = vpop.f32.mrb[0].mxu0
        %v489 = vadd.f32 %v318, %v488
        %v490 = vpop.f32.mrb[0].mxu0
        %491 = vmatprep.mubr.f32.mxu0 0.0
        %492 = vmatmul.mubr.f32.gmra.mrb[0].mxu0 %v328
        %v493 = vpop.f32.mrb[0].mxu0
        %v494 = vadd.f32 %v318, %v493
        %v495 = vpop.f32.mrb[0].mxu0
        %496 = vmatprep.mubr.f32.mxu0 0.0
        %497 = vmatmul.mubr.f32.gmra.mrb[0].mxu0 %v331
        %v498 = vpop.f32.mrb[0].mxu0
        %v499 = vadd.f32 %v318, %v498
        %v500 = vpop.f32.mrb[0].mxu0
        %501 = vmatprep.mubr.f32.mxu0 0.0
        %502 = vmatmul.mubr.f32.gmra.mrb[0].mxu0 %v334
        %v503 = vpop.f32.mrb[0].mxu0
        %v504 = vadd.f32 %v318, %v503
        %v505 = vpop.f32.mrb[0].mxu0
        %506 = vmatprep.mubr.f32.mxu0 0.0
        %507 = vmatmul.mubr.f32.gmra.mrb[0].mxu0 %v337
        %v508 = vpop.f32.mrb[0].mxu0
        %v509 = vadd.f32 %v318, %v508
        %v510 = vpop.f32.mrb[0].mxu0
        %511 = vmatprep.mubr.f32.mxu0 0.0
        %512 = vmatmul.mubr.f32.gmra.mrb[0].mxu0 %v340
        %v513 = vpop.f32.mrb[0].mxu0
        %v514 = vadd.f32 %v318, %v513
        %v515 = vpop.f32.mrb[0].mxu0
        %516 = vmatprep.mubr.f32.mxu0 0.0
        %517 = vmatmul.mubr.f32.gmra.mrb[0].mxu0 %v343
        %v518 = vpop.f32.mrb[0].mxu0
        %v519 = vadd.f32 %v318, %v518
        %v520 = vpop.f32.mrb[0].mxu0
        %521 = vmatprep.mubr.f32.mxu0 0.0
        %522 = vmatmul.mubr.f32.gmra.mrb[0].mxu0 %v346
        %v523 = vpop.f32.mrb[0].mxu0
        %v524 = vadd.f32 %v318, %v523
        %v525 = vpop.f32.mrb[0].mxu0
        %526 = vmatprep.mubr.f32.mxu0 0.0
        %527 = vmatmul.mubr.f32.gmra.mrb[0].mxu0 %v349
        %v528 = vpop.f32.mrb[0].mxu0
        %v529 = vadd.f32 %v318, %v528
        %v530 = vpop.f32.mrb[0].mxu0
        %531 = vmatprep.mubr.f32.mxu0 0.0
        %532 = vmatmul.mubr.f32.gmra.mrb[0].mxu0 %v352
        %v533 = vpop.f32.mrb[0].mxu0
        %v534 = vadd.f32 %v318, %v533
        %v535 = vpop.f32.mrb[0].mxu0
        %536 = vmatprep.mubr.f32.mxu0 0.0
        %537 = vmatmul.mubr.f32.gmra.mrb[0].mxu0 %v355
        %v538 = vpop.f32.mrb[0].mxu0
        %v539 = vadd.f32 %v318, %v538
        %v540 = vpop.f32.mrb[0].mxu0
        %541 = vmatprep.mubr.f32.mxu0 0.0
        %542 = vmatmul.mubr.f32.gmra.mrb[0].mxu0 %v358
        %v543 = vpop.f32.mrb[0].mxu0
        %v544 = vadd.f32 %v318, %v543
        %v545 = vpop.f32.mrb[0].mxu0
        %546 = vmatprep.mubr.f32.mxu0 0.0
        %547 = vmatmul.mubr.f32.gmra.mrb[0].mxu0 %v361
        %v548 = vpop.f32.mrb[0].mxu0
        %v549 = vadd.f32 %v318, %v548
        %v550 = vpop.f32.mrb[0].mxu0
        %551 = vmatprep.mubr.f32.mxu0 0.0
        %552 = vmatmul.mubr.f32.gmra.mrb[0].mxu0 %v364
        %v553 = vpop.f32.mrb[0].mxu0
        %v554 = vadd.f32 %v318, %v553
        %v555 = vpop.f32.mrb[0].mxu0
        %556 = vmatprep.mubr.f32.mxu0 0.0
        %557 = vmatmul.mubr.f32.gmra.mrb[0].mxu0 %v367
        %v558 = vpop.f32.mrb[0].mxu0
        %v559 = vadd.f32 %v318, %v558
        %v560 = vpop.f32.mrb[0].mxu0
        %561 = vmatprep.mubr.f32.mxu0 0.0
        %562 = vmatmul.mubr.f32.gmra.mrb[0].mxu0 %v370
        %v563 = vpop.f32.mrb[0].mxu0
        %v564 = vadd.f32 %v318, %v563
        %v565 = vpop.f32.mrb[0].mxu0
        %566 = vmatprep.mubr.f32.mxu0 0.0
        %567 = vmatmul.mubr.f32.gmra.mrb[0].mxu0 %v373
        %v568 = vpop.f32.mrb[0].mxu0
        %v569 = vadd.f32 %v318, %v568
        %v570 = vpop.f32.mrb[0].mxu0
        %571 = vmatprep.mubr.f32.mxu0 0.0
        %572 = vmatmul.mubr.f32.gmra.mrb[0].mxu0 %v376
        %v573 = vpop.f32.mrb[0].mxu0
        %v574 = vadd.f32 %v318, %v573
        %v575 = vpop.f32.mrb[0].mxu0
        %576 = vmatprep.mubr.f32.mxu0 0.0
        %577 = vmatmul.mubr.f32.gmra.mrb[0].mxu0 %v379
        %v578 = vpop.f32.mrb[0].mxu0
        %v579 = vadd.f32 %v318, %v578
        %v580 = vpop.f32.mrb[0].mxu0
        %581 = vmatprep.mubr.f32.mxu0 0.0
        %582 = vmatmul.mubr.f32.gmra.mrb[0].mxu0 %v382
        %v583 = vpop.f32.mrb[0].mxu0
        %v584 = vadd.f32 %v318, %v583
        %v585 = vpop.f32.mrb[0].mxu0
        %586 = vmatprep.mubr.f32.mxu0 0.0
        %587 = vmatmul.mubr.f32.gmra.mrb[0].mxu0 %v385
        %v588 = vpop.f32.mrb[0].mxu0
        %v589 = vadd.f32 %v318, %v588
        %v590 = vpop.f32.mrb[0].mxu0
        %591 = vmatprep.mubr.f32.mxu0 0.0
        %592 = vmatmul.mubr.f32.gmra.mrb[0].mxu0 %v388
        %v593 = vpop.f32.mrb[0].mxu0
        %v594 = vadd.f32 %v318, %v593
        %v595 = vpop.f32.mrb[0].mxu0
        %596 = vmatprep.mubr.f32.mxu0 0.0
        %597 = vmatmul.mubr.f32.gmra.mrb[0].mxu0 %v391
        %v598 = vpop.f32.mrb[0].mxu0
        %v599 = vadd.f32 %v318, %v598
        %v600 = vpop.f32.mrb[0].mxu0
        %601 = vmatprep.mubr.f32.mxu0 0.0
        %602 = vmatmul.mubr.f32.gmra.mrb[0].mxu0 %v394
        %v603 = vpop.f32.mrb[0].mxu0
        %v604 = vadd.f32 %v318, %v603
        %v605 = vpop.f32.mrb[0].mxu0
        %606 = vmatprep.mubr.f32.mxu0 0.0
        %607 = vmatmul.mubr.f32.gmra.mrb[0].mxu0 %v397
        %v608 = vpop.f32.mrb[0].mxu0
        %v609 = vadd.f32 %v318, %v608
        %v610 = vpop.f32.mrb[0].mxu0
        %611 = vmatprep.mubr.f32.mxu0 0.0
        %612 = vmatmul.mubr.f32.gmra.mrb[0].mxu0 %v400
        %v613 = vpop.f32.mrb[0].mxu0
        %v614 = vadd.f32 %v318, %v613
        %v615 = vpop.f32.mrb[0].mxu0
        %616 = vmatprep.mubr.f32.mxu0 0.0
        %617 = vmatmul.mubr.f32.gmra.mrb[0].mxu0 %v403
        %v618 = vpop.f32.mrb[0].mxu0
        %v619 = vadd.f32 %v318, %v618
        %v620 = vpop.f32.mrb[0].mxu0
        %621 = vmatprep.mubr.f32.mxu0 0.0
        %622 = vmatmul.mubr.f32.gmra.mrb[0].mxu0 %v406
        %v623 = vpop.f32.mrb[0].mxu0
        %v624 = vadd.f32 %v318, %v623
        %v625 = vpop.f32.mrb[0].mxu0
        %626 = vmatprep.mubr.f32.mxu0 0.0
        %627 = vmatmul.mubr.f32.gmra.mrb[0].mxu0 %v409
        %v628 = vpop.f32.mrb[0].mxu0
        %v629 = vadd.f32 %v318, %v628
        %v630 = vpop.f32.mrb[0].mxu0
        %631 = vmatprep.mubr.f32.mxu0 0.0
        %632 = vmatmul.mubr.f32.gmra.mrb[0].mxu0 %v412
        %v633 = vpop.f32.mrb[0].mxu0
        %v634 = vadd.f32 %v318, %v633
        %v635 = vpop.f32.mrb[0].mxu0
        %636 = vmatprep.mubr.f32.mxu0 0.0
        %637 = vmatmul.mubr.f32.gmra.mrb[0].mxu0 %v415
        %v638 = vpop.f32.mrb[0].mxu0
        %v639 = vadd.f32 %v318, %v638
        %v640 = vpop.f32.mrb[0].mxu0
        %641 = vdwg.mxu0
        %v642 = vmax.f32 %v484, 0.0
        %v643 = vmax.f32 %v489, 0.0
        %v644 = vmax.f32 %v494, 0.0
        %v645 = vmax.f32 %v499, 0.0
        %v646 = vmax.f32 %v504, 0.0
        %v647 = vmax.f32 %v509, 0.0
        %v648 = vmax.f32 %v514, 0.0
        %v649 = vmax.f32 %v519, 0.0
        %v650 = vmax.f32 %v524, 0.0
        %v651 = vmax.f32 %v529, 0.0
        %v652 = vmax.f32 %v534, 0.0
        %v653 = vmax.f32 %v539, 0.0
        %v654 = vmax.f32 %v544, 0.0
        %v655 = vmax.f32 %v549, 0.0
        %v656 = vmax.f32 %v554, 0.0
        %v657 = vmax.f32 %v559, 0.0
        %v658 = vmax.f32 %v564, 0.0
        %v659 = vmax.f32 %v569, 0.0
        %v660 = vmax.f32 %v574, 0.0
        %v661 = vmax.f32 %v579, 0.0
        %v662 = vmax.f32 %v584, 0.0
        %v663 = vmax.f32 %v589, 0.0
        %v664 = vmax.f32 %v594, 0.0
        %v665 = vmax.f32 %v599, 0.0
        %v666 = vmax.f32 %v604, 0.0
        %v667 = vmax.f32 %v609, 0.0
        %v668 = vmax.f32 %v614, 0.0
        %v669 = vmax.f32 %v619, 0.0
        %v670 = vmax.f32 %v624, 0.0
        %v671 = vmax.f32 %v629, 0.0
        %v672 = vmax.f32 %v634, 0.0
        %v673 = vmax.f32 %v639, 0.0
        %v674 = vld [vmem:[%s3] sm:$0xff]
        %v675 = vld [vmem:[%s3 + $0x8] sm:$0xff]
        %v676 = vld [vmem:[%s3 + $0x10] sm:$0xff]
        %v677 = vld [vmem:[%s3 + $0x18] sm:$0xff]
        %v678 = vld [vmem:[%s3 + $0x20] sm:$0xff]
        %v679 = vld [vmem:[%s3 + $0x28] sm:$0xff]
        %v680 = vld [vmem:[%s3 + $0x30] sm:$0xff]
        %v681 = vld [vmem:[%s3 + $0x38] sm:$0xff]
        %v682 = vld [vmem:[%s3 + $0x40] sm:$0xff]
        %v683 = vld [vmem:[%s3 + $0x48] sm:$0xff]
        %v684 = vld [vmem:[%s3 + $0x50] sm:$0xff]
        %v685 = vld [vmem:[%s3 + $0x58] sm:$0xff]
        %v686 = vld [vmem:[%s3 + $0x60] sm:$0xff]
        %v687 = vld [vmem:[%s3 + $0x68] sm:$0xff]
        %v688 = vld [vmem:[%s3 + $0x70] sm:$0xff]
        %v689 = vld [vmem:[%s3 + $0x78] sm:$0xff]
        %v690 = vld [vmem:[%s4] sm:$0x1]
        %v692 = vlaneseq
        %v693 = vshrl.u32 %v692, 7
        %v694 = vsub.s32 0, %v693
        %v695 = vrot.slane %v690, %v694
        %697 = vmatprep.subr.mxu0 0.0
        %698 = vmatpush1.msra.mxu0 %v674
        %699 = vmatprep.subr.mxu0 0.0
        %700 = vmatpush1.msra.mxu0 %v675
        %701 = vmatprep.subr.mxu0 0.0
        %702 = vmatpush1.msra.mxu0 %v676
        %703 = vmatprep.subr.mxu0 0.0
        %704 = vmatpush1.msra.mxu0 %v677
        %705 = vmatprep.subr.mxu0 0.0
        %706 = vmatpush1.msra.mxu0 %v678
        %707 = vmatprep.subr.mxu0 0.0
        %708 = vmatpush1.msra.mxu0 %v679
        %709 = vmatprep.subr.mxu0 0.0
        %710 = vmatpush1.msra.mxu0 %v680
        %711 = vmatprep.subr.mxu0 0.0
        %712 = vmatpush1.msra.mxu0 %v681
        %713 = vmatprep.subr.mxu0 0.0
        %714 = vmatpush1.msra.mxu0 %v682
        %715 = vmatprep.subr.mxu0 0.0
        %716 = vmatpush1.msra.mxu0 %v683
        %717 = vmatprep.subr.mxu0 0.0
        %718 = vmatpush1.msra.mxu0 %v684
        %719 = vmatprep.subr.mxu0 0.0
        %720 = vmatpush1.msra.mxu0 %v685
        %721 = vmatprep.subr.mxu0 0.0
        %722 = vmatpush1.msra.mxu0 %v686
        %723 = vmatprep.subr.mxu0 0.0
        %724 = vmatpush1.msra.mxu0 %v687
        %725 = vmatprep.subr.mxu0 0.0
        %726 = vmatpush1.msra.mxu0 %v688
        %727 = vmatprep.subr.mxu0 0.0
        %728 = vmatpush1.msra.mxu0 %v689
        %729 = vmatprep.subr.mxu0 0.0
        %730 = vmatpush1.msra.mxu0 0.0
        %731 = vmatprep.subr.mxu0 0.0
        %732 = vmatpush1.msra.mxu0 0.0
        %733 = vmatprep.subr.mxu0 0.0
        %734 = vmatpush1.msra.mxu0 0.0
        %735 = vmatprep.subr.mxu0 0.0
        %736 = vmatpush1.msra.mxu0 0.0
        %737 = vmatprep.subr.mxu0 0.0
        %738 = vmatpush1.msra.mxu0 0.0
        %739 = vmatprep.subr.mxu0 0.0
        %740 = vmatpush1.msra.mxu0 0.0
        %741 = vmatprep.subr.mxu0 0.0
        %742 = vmatpush1.msra.mxu0 0.0
        %743 = vmatprep.subr.mxu0 0.0
        %744 = vmatpush1.msra.mxu0 0.0
        %745 = vmatprep.subr.mxu0 0.0
        %746 = vmatpush1.msra.mxu0 0.0
        %747 = vmatprep.subr.mxu0 0.0
        %748 = vmatpush1.msra.mxu0 0.0
        %749 = vmatprep.subr.mxu0 0.0
        %750 = vmatpush1.msra.mxu0 0.0
        %751 = vmatprep.subr.mxu0 0.0
        %752 = vmatpush1.msra.mxu0 0.0
        %753 = vmatprep.subr.mxu0 0.0
        %754 = vmatpush1.msra.mxu0 0.0
        %755 = vmatprep.subr.mxu0 0.0
        %756 = vmatpush1.msra.mxu0 0.0
        %757 = vmatprep.subr.mxu0 0.0
        %758 = vmatpush1.msra.mxu0 0.0
        %759 = vmatprep.subr.mxu0 0.0
        %760 = vmatpush1.msra.mxu0 0.0
        %761 = vmatprep.mubr.f32.mxu0 0.0
        %762 = vmatmul.mubr.f32.gmra.mrb[0].mxu0 %v642
        %v763 = vpop.f32.mrb[0].mxu0
        %v764 = vadd.f32 %v695, %v763
        %v765 = vpop.f32.mrb[0].mxu0
        %766 = vmatprep.mubr.f32.mxu0 0.0
        %767 = vmatmul.mubr.f32.gmra.mrb[0].mxu0 %v643
        %v768 = vpop.f32.mrb[0].mxu0
        %v769 = vadd.f32 %v695, %v768
        %v770 = vpop.f32.mrb[0].mxu0
        %771 = vmatprep.mubr.f32.mxu0 0.0
        %772 = vmatmul.mubr.f32.gmra.mrb[0].mxu0 %v644
        %v773 = vpop.f32.mrb[0].mxu0
        %v774 = vadd.f32 %v695, %v773
        %v775 = vpop.f32.mrb[0].mxu0
        %776 = vmatprep.mubr.f32.mxu0 0.0
        %777 = vmatmul.mubr.f32.gmra.mrb[0].mxu0 %v645
        %v778 = vpop.f32.mrb[0].mxu0
        %v779 = vadd.f32 %v695, %v778
        %v780 = vpop.f32.mrb[0].mxu0
        %781 = vmatprep.mubr.f32.mxu0 0.0
        %782 = vmatmul.mubr.f32.gmra.mrb[0].mxu0 %v646
        %v783 = vpop.f32.mrb[0].mxu0
        %v784 = vadd.f32 %v695, %v783
        %v785 = vpop.f32.mrb[0].mxu0
        %786 = vmatprep.mubr.f32.mxu0 0.0
        %787 = vmatmul.mubr.f32.gmra.mrb[0].mxu0 %v647
        %v788 = vpop.f32.mrb[0].mxu0
        %v789 = vadd.f32 %v695, %v788
        %v790 = vpop.f32.mrb[0].mxu0
        %791 = vmatprep.mubr.f32.mxu0 0.0
        %792 = vmatmul.mubr.f32.gmra.mrb[0].mxu0 %v648
        %v793 = vpop.f32.mrb[0].mxu0
        %v794 = vadd.f32 %v695, %v793
        %v795 = vpop.f32.mrb[0].mxu0
        %796 = vmatprep.mubr.f32.mxu0 0.0
        %797 = vmatmul.mubr.f32.gmra.mrb[0].mxu0 %v649
        %v798 = vpop.f32.mrb[0].mxu0
        %v799 = vadd.f32 %v695, %v798
        %v800 = vpop.f32.mrb[0].mxu0
        %801 = vmatprep.mubr.f32.mxu0 0.0
        %802 = vmatmul.mubr.f32.gmra.mrb[0].mxu0 %v650
        %v803 = vpop.f32.mrb[0].mxu0
        %v804 = vadd.f32 %v695, %v803
        %v805 = vpop.f32.mrb[0].mxu0
        %806 = vmatprep.mubr.f32.mxu0 0.0
        %807 = vmatmul.mubr.f32.gmra.mrb[0].mxu0 %v651
        %v808 = vpop.f32.mrb[0].mxu0
        %v809 = vadd.f32 %v695, %v808
        %v810 = vpop.f32.mrb[0].mxu0
        %811 = vmatprep.mubr.f32.mxu0 0.0
        %812 = vmatmul.mubr.f32.gmra.mrb[0].mxu0 %v652
        %v813 = vpop.f32.mrb[0].mxu0
        %v814 = vadd.f32 %v695, %v813
        %v815 = vpop.f32.mrb[0].mxu0
        %816 = vmatprep.mubr.f32.mxu0 0.0
        %817 = vmatmul.mubr.f32.gmra.mrb[0].mxu0 %v653
        %v818 = vpop.f32.mrb[0].mxu0
        %v819 = vadd.f32 %v695, %v818
        %v820 = vpop.f32.mrb[0].mxu0
        %821 = vmatprep.mubr.f32.mxu0 0.0
        %822 = vmatmul.mubr.f32.gmra.mrb[0].mxu0 %v654
        %v823 = vpop.f32.mrb[0].mxu0
        %v824 = vadd.f32 %v695, %v823
        %v825 = vpop.f32.mrb[0].mxu0
        %826 = vmatprep.mubr.f32.mxu0 0.0
        %827 = vmatmul.mubr.f32.gmra.mrb[0].mxu0 %v655
        %v828 = vpop.f32.mrb[0].mxu0
        %v829 = vadd.f32 %v695, %v828
        %v830 = vpop.f32.mrb[0].mxu0
        %831 = vmatprep.mubr.f32.mxu0 0.0
        %832 = vmatmul.mubr.f32.gmra.mrb[0].mxu0 %v656
        %v833 = vpop.f32.mrb[0].mxu0
        %v834 = vadd.f32 %v695, %v833
        %v835 = vpop.f32.mrb[0].mxu0
        %836 = vmatprep.mubr.f32.mxu0 0.0
        %837 = vmatmul.mubr.f32.gmra.mrb[0].mxu0 %v657
        %v838 = vpop.f32.mrb[0].mxu0
        %v839 = vadd.f32 %v695, %v838
        %v840 = vpop.f32.mrb[0].mxu0
        %841 = vmatprep.mubr.f32.mxu0 0.0
        %842 = vmatmul.mubr.f32.gmra.mrb[0].mxu0 %v658
        %v843 = vpop.f32.mrb[0].mxu0
        %v844 = vadd.f32 %v695, %v843
        %v845 = vpop.f32.mrb[0].mxu0
        %846 = vmatprep.mubr.f32.mxu0 0.0
        %847 = vmatmul.mubr.f32.gmra.mrb[0].mxu0 %v659
        %v848 = vpop.f32.mrb[0].mxu0
        %v849 = vadd.f32 %v695, %v848
        %v850 = vpop.f32.mrb[0].mxu0
        %851 = vmatprep.mubr.f32.mxu0 0.0
        %852 = vmatmul.mubr.f32.gmra.mrb[0].mxu0 %v660
        %v853 = vpop.f32.mrb[0].mxu0
        %v854 = vadd.f32 %v695, %v853
        %v855 = vpop.f32.mrb[0].mxu0
        %856 = vmatprep.mubr.f32.mxu0 0.0
        %857 = vmatmul.mubr.f32.gmra.mrb[0].mxu0 %v661
        %v858 = vpop.f32.mrb[0].mxu0
        %v859 = vadd.f32 %v695, %v858
        %v860 = vpop.f32.mrb[0].mxu0
        %861 = vmatprep.mubr.f32.mxu0 0.0
        %862 = vmatmul.mubr.f32.gmra.mrb[0].mxu0 %v662
        %v863 = vpop.f32.mrb[0].mxu0
        %v864 = vadd.f32 %v695, %v863
        %v865 = vpop.f32.mrb[0].mxu0
        %866 = vmatprep.mubr.f32.mxu0 0.0
        %867 = vmatmul.mubr.f32.gmra.mrb[0].mxu0 %v663
        %v868 = vpop.f32.mrb[0].mxu0
        %v869 = vadd.f32 %v695, %v868
        %v870 = vpop.f32.mrb[0].mxu0
        %871 = vmatprep.mubr.f32.mxu0 0.0
        %872 = vmatmul.mubr.f32.gmra.mrb[0].mxu0 %v664
        %v873 = vpop.f32.mrb[0].mxu0
        %v874 = vadd.f32 %v695, %v873
        %v875 = vpop.f32.mrb[0].mxu0
        %876 = vmatprep.mubr.f32.mxu0 0.0
        %877 = vmatmul.mubr.f32.gmra.mrb[0].mxu0 %v665
        %v878 = vpop.f32.mrb[0].mxu0
        %v879 = vadd.f32 %v695, %v878
        %v880 = vpop.f32.mrb[0].mxu0
        %881 = vmatprep.mubr.f32.mxu0 0.0
        %882 = vmatmul.mubr.f32.gmra.mrb[0].mxu0 %v666
        %v883 = vpop.f32.mrb[0].mxu0
        %v884 = vadd.f32 %v695, %v883
        %v885 = vpop.f32.mrb[0].mxu0
        %886 = vmatprep.mubr.f32.mxu0 0.0
        %887 = vmatmul.mubr.f32.gmra.mrb[0].mxu0 %v667
        %v888 = vpop.f32.mrb[0].mxu0
        %v889 = vadd.f32 %v695, %v888
        %v890 = vpop.f32.mrb[0].mxu0
        %891 = vmatprep.mubr.f32.mxu0 0.0
        %892 = vmatmul.mubr.f32.gmra.mrb[0].mxu0 %v668
        %v893 = vpop.f32.mrb[0].mxu0
        %v894 = vadd.f32 %v695, %v893
        %v895 = vpop.f32.mrb[0].mxu0
        %896 = vmatprep.mubr.f32.mxu0 0.0
        %897 = vmatmul.mubr.f32.gmra.mrb[0].mxu0 %v669
        %v898 = vpop.f32.mrb[0].mxu0
        %v899 = vadd.f32 %v695, %v898
        %v900 = vpop.f32.mrb[0].mxu0
        %901 = vmatprep.mubr.f32.mxu0 0.0
        %902 = vmatmul.mubr.f32.gmra.mrb[0].mxu0 %v670
        %v903 = vpop.f32.mrb[0].mxu0
        %v904 = vadd.f32 %v695, %v903
        %v905 = vpop.f32.mrb[0].mxu0
        %906 = vmatprep.mubr.f32.mxu0 0.0
        %907 = vmatmul.mubr.f32.gmra.mrb[0].mxu0 %v671
        %v908 = vpop.f32.mrb[0].mxu0
        %v909 = vadd.f32 %v695, %v908
        %v910 = vpop.f32.mrb[0].mxu0
        %911 = vmatprep.mubr.f32.mxu0 0.0
        %912 = vmatmul.mubr.f32.gmra.mrb[0].mxu0 %v672
        %v913 = vpop.f32.mrb[0].mxu0
        %v914 = vadd.f32 %v695, %v913
        %v915 = vpop.f32.mrb[0].mxu0
        %916 = vmatprep.mubr.f32.mxu0 0.0
        %917 = vmatmul.mubr.f32.gmra.mrb[0].mxu0 %v673
        %v918 = vpop.f32.mrb[0].mxu0
        %v919 = vadd.f32 %v695, %v918
        %v920 = vpop.f32.mrb[0].mxu0
        %921 = vdwg.mxu0
        %v922 = vmax.f32 %v764, 0.0
        %v923 = vmax.f32 %v769, 0.0
        %v924 = vmax.f32 %v774, 0.0
        %v925 = vmax.f32 %v779, 0.0
        %v926 = vmax.f32 %v784, 0.0
        %v927 = vmax.f32 %v789, 0.0
        %v928 = vmax.f32 %v794, 0.0
        %v929 = vmax.f32 %v799, 0.0
        %v930 = vmax.f32 %v804, 0.0
        %v931 = vmax.f32 %v809, 0.0
        %v932 = vmax.f32 %v814, 0.0
        %v933 = vmax.f32 %v819, 0.0
        %v934 = vmax.f32 %v824, 0.0
        %v935 = vmax.f32 %v829, 0.0
        %v936 = vmax.f32 %v834, 0.0
        %v937 = vmax.f32 %v839, 0.0
        %v938 = vmax.f32 %v844, 0.0
        %v939 = vmax.f32 %v849, 0.0
        %v940 = vmax.f32 %v854, 0.0
        %v941 = vmax.f32 %v859, 0.0
        %v942 = vmax.f32 %v864, 0.0
        %v943 = vmax.f32 %v869, 0.0
        %v944 = vmax.f32 %v874, 0.0
        %v945 = vmax.f32 %v879, 0.0
        %v946 = vmax.f32 %v884, 0.0
        %v947 = vmax.f32 %v889, 0.0
        %v948 = vmax.f32 %v894, 0.0
        %v949 = vmax.f32 %v899, 0.0
        %v950 = vmax.f32 %v904, 0.0
        %v951 = vmax.f32 %v909, 0.0
        %v952 = vmax.f32 %v914, 0.0
        %v953 = vmax.f32 %v919, 0.0
        %v954 = vld [vmem:[%s5] sm:$0xff]
        %v955 = vld [vmem:[%s5 + $0x8] sm:$0xff]
        %v956 = vld [vmem:[%s5 + $0x10] sm:$0xff]
        %v957 = vld [vmem:[%s5 + $0x18] sm:$0xff]
        %v958 = vld [vmem:[%s5 + $0x20] sm:$0xff]
        %v959 = vld [vmem:[%s5 + $0x28] sm:$0xff]
        %v960 = vld [vmem:[%s5 + $0x30] sm:$0xff]
        %v961 = vld [vmem:[%s5 + $0x38] sm:$0xff]
        %v962 = vld [vmem:[%s6] sm:$0x1]
        %v964 = vlaneseq
        %v965 = vshrl.u32 %v964, 7
        %v966 = vsub.s32 0, %v965
        %v967 = vrot.slane %v962, %v966
        %vm969 = vcmask 523264
        %v971 = vsel %vm969, %v922, 0
        %v974 = vsel %vm969, %v923, 0
        %v977 = vsel %vm969, %v924, 0
        %v980 = vsel %vm969, %v925, 0
        %v983 = vsel %vm969, %v926, 0
        %v986 = vsel %vm969, %v927, 0
        %v989 = vsel %vm969, %v928, 0
        %v992 = vsel %vm969, %v929, 0
        %v995 = vsel %vm969, %v930, 0
        %v998 = vsel %vm969, %v931, 0
        %v1001 = vsel %vm969, %v932, 0
        %v1004 = vsel %vm969, %v933, 0
        %v1007 = vsel %vm969, %v934, 0
        %v1010 = vsel %vm969, %v935, 0
        %v1013 = vsel %vm969, %v936, 0
        %v1016 = vsel %vm969, %v937, 0
        %v1019 = vsel %vm969, %v938, 0
        %v1022 = vsel %vm969, %v939, 0
        %v1025 = vsel %vm969, %v940, 0
        %v1028 = vsel %vm969, %v941, 0
        %v1031 = vsel %vm969, %v942, 0
        %v1034 = vsel %vm969, %v943, 0
        %v1037 = vsel %vm969, %v944, 0
        %v1040 = vsel %vm969, %v945, 0
        %v1043 = vsel %vm969, %v946, 0
        %v1046 = vsel %vm969, %v947, 0
        %v1049 = vsel %vm969, %v948, 0
        %v1052 = vsel %vm969, %v949, 0
        %v1055 = vsel %vm969, %v950, 0
        %v1058 = vsel %vm969, %v951, 0
        %v1061 = vsel %vm969, %v952, 0
        %v1064 = vsel %vm969, %v953, 0
        %1066 = vmatprep.subr.mxu0 0.0
        %1067 = vmatpush1.msra.mxu0 %v954
        %1068 = vmatprep.subr.mxu0 0.0
        %1069 = vmatpush1.msra.mxu0 %v955
        %1070 = vmatprep.subr.mxu0 0.0
        %1071 = vmatpush1.msra.mxu0 %v956
        %1072 = vmatprep.subr.mxu0 0.0
        %1073 = vmatpush1.msra.mxu0 %v957
        %1074 = vmatprep.subr.mxu0 0.0
        %1075 = vmatpush1.msra.mxu0 %v958
        %1076 = vmatprep.subr.mxu0 0.0
        %1077 = vmatpush1.msra.mxu0 %v959
        %1078 = vmatprep.subr.mxu0 0.0
        %1079 = vmatpush1.msra.mxu0 %v960
        %1080 = vmatprep.subr.mxu0 0.0
        %1081 = vmatpush1.msra.mxu0 %v961
        %1082 = vmatprep.subr.mxu0 0.0
        %1083 = vmatpush1.msra.mxu0 0.0
        %1084 = vmatprep.subr.mxu0 0.0
        %1085 = vmatpush1.msra.mxu0 0.0
        %1086 = vmatprep.subr.mxu0 0.0
        %1087 = vmatpush1.msra.mxu0 0.0
        %1088 = vmatprep.subr.mxu0 0.0
        %1089 = vmatpush1.msra.mxu0 0.0
        %1090 = vmatprep.subr.mxu0 0.0
        %1091 = vmatpush1.msra.mxu0 0.0
        %1092 = vmatprep.subr.mxu0 0.0
        %1093 = vmatpush1.msra.mxu0 0.0
        %1094 = vmatprep.subr.mxu0 0.0
        %1095 = vmatpush1.msra.mxu0 0.0
        %1096 = vmatprep.subr.mxu0 0.0
        %1097 = vmatpush1.msra.mxu0 0.0
        %1098 = vmatprep.subr.mxu0 0.0
        %1099 = vmatpush1.msra.mxu0 0.0
        %1100 = vmatprep.subr.mxu0 0.0
        %1101 = vmatpush1.msra.mxu0 0.0
        %1102 = vmatprep.subr.mxu0 0.0
        %1103 = vmatpush1.msra.mxu0 0.0
        %1104 = vmatprep.subr.mxu0 0.0
        %1105 = vmatpush1.msra.mxu0 0.0
        %1106 = vmatprep.subr.mxu0 0.0
        %1107 = vmatpush1.msra.mxu0 0.0
        %1108 = vmatprep.subr.mxu0 0.0
        %1109 = vmatpush1.msra.mxu0 0.0
        %1110 = vmatprep.subr.mxu0 0.0
        %1111 = vmatpush1.msra.mxu0 0.0
        %1112 = vmatprep.subr.mxu0 0.0
        %1113 = vmatpush1.msra.mxu0 0.0
        %1114 = vmatprep.subr.mxu0 0.0
        %1115 = vmatpush1.msra.mxu0 0.0
        %1116 = vmatprep.subr.mxu0 0.0
        %1117 = vmatpush1.msra.mxu0 0.0
        %1118 = vmatprep.subr.mxu0 0.0
        %1119 = vmatpush1.msra.mxu0 0.0
        %1120 = vmatprep.subr.mxu0 0.0
        %1121 = vmatpush1.msra.mxu0 0.0
        %1122 = vmatprep.subr.mxu0 0.0
        %1123 = vmatpush1.msra.mxu0 0.0
        %1124 = vmatprep.subr.mxu0 0.0
        %1125 = vmatpush1.msra.mxu0 0.0
        %1126 = vmatprep.subr.mxu0 0.0
        %1127 = vmatpush1.msra.mxu0 0.0
        %1128 = vmatprep.subr.mxu0 0.0
        %1129 = vmatpush1.msra.mxu0 0.0
        %1130 = vmatprep.mubr.f32.mxu0 0.0
        %1131 = vmatmul.mubr.f32.gmra.mrb[0].mxu0 %v971
        %v1132 = vpop.f32.mrb[0].mxu0
        %v1133 = vadd.f32 %v967, %v1132
        %v1134 = vpop.f32.mrb[0].mxu0
        %1135 = vmatprep.mubr.f32.mxu0 0.0
        %1136 = vmatmul.mubr.f32.gmra.mrb[0].mxu0 %v974
        %v1137 = vpop.f32.mrb[0].mxu0
        %v1138 = vadd.f32 %v967, %v1137
        %v1139 = vpop.f32.mrb[0].mxu0
        %1140 = vmatprep.mubr.f32.mxu0 0.0
        %1141 = vmatmul.mubr.f32.gmra.mrb[0].mxu0 %v977
        %v1142 = vpop.f32.mrb[0].mxu0
        %v1143 = vadd.f32 %v967, %v1142
        %v1144 = vpop.f32.mrb[0].mxu0
        %1145 = vmatprep.mubr.f32.mxu0 0.0
        %1146 = vmatmul.mubr.f32.gmra.mrb[0].mxu0 %v980
        %v1147 = vpop.f32.mrb[0].mxu0
        %v1148 = vadd.f32 %v967, %v1147
        %v1149 = vpop.f32.mrb[0].mxu0
        %1150 = vmatprep.mubr.f32.mxu0 0.0
        %1151 = vmatmul.mubr.f32.gmra.mrb[0].mxu0 %v983
        %v1152 = vpop.f32.mrb[0].mxu0
        %v1153 = vadd.f32 %v967, %v1152
        %v1154 = vpop.f32.mrb[0].mxu0
        %1155 = vmatprep.mubr.f32.mxu0 0.0
        %1156 = vmatmul.mubr.f32.gmra.mrb[0].mxu0 %v986
        %v1157 = vpop.f32.mrb[0].mxu0
        %v1158 = vadd.f32 %v967, %v1157
        %v1159 = vpop.f32.mrb[0].mxu0
        %1160 = vmatprep.mubr.f32.mxu0 0.0
        %1161 = vmatmul.mubr.f32.gmra.mrb[0].mxu0 %v989
        %v1162 = vpop.f32.mrb[0].mxu0
        %v1163 = vadd.f32 %v967, %v1162
        %v1164 = vpop.f32.mrb[0].mxu0
        %1165 = vmatprep.mubr.f32.mxu0 0.0
        %1166 = vmatmul.mubr.f32.gmra.mrb[0].mxu0 %v992
        %v1167 = vpop.f32.mrb[0].mxu0
        %v1168 = vadd.f32 %v967, %v1167
        %v1169 = vpop.f32.mrb[0].mxu0
        %1170 = vmatprep.mubr.f32.mxu0 0.0
        %1171 = vmatmul.mubr.f32.gmra.mrb[0].mxu0 %v995
        %v1172 = vpop.f32.mrb[0].mxu0
        %v1173 = vadd.f32 %v967, %v1172
        %v1174 = vpop.f32.mrb[0].mxu0
        %1175 = vmatprep.mubr.f32.mxu0 0.0
        %1176 = vmatmul.mubr.f32.gmra.mrb[0].mxu0 %v998
        %v1177 = vpop.f32.mrb[0].mxu0
        %v1178 = vadd.f32 %v967, %v1177
        %v1179 = vpop.f32.mrb[0].mxu0
        %1180 = vmatprep.mubr.f32.mxu0 0.0
        %1181 = vmatmul.mubr.f32.gmra.mrb[0].mxu0 %v1001
        %v1182 = vpop.f32.mrb[0].mxu0
        %v1183 = vadd.f32 %v967, %v1182
        %v1184 = vpop.f32.mrb[0].mxu0
        %1185 = vmatprep.mubr.f32.mxu0 0.0
        %1186 = vmatmul.mubr.f32.gmra.mrb[0].mxu0 %v1004
        %v1187 = vpop.f32.mrb[0].mxu0
        %v1188 = vadd.f32 %v967, %v1187
        %v1189 = vpop.f32.mrb[0].mxu0
        %1190 = vmatprep.mubr.f32.mxu0 0.0
        %1191 = vmatmul.mubr.f32.gmra.mrb[0].mxu0 %v1007
        %v1192 = vpop.f32.mrb[0].mxu0
        %v1193 = vadd.f32 %v967, %v1192
        %v1194 = vpop.f32.mrb[0].mxu0
        %1195 = vmatprep.mubr.f32.mxu0 0.0
        %1196 = vmatmul.mubr.f32.gmra.mrb[0].mxu0 %v1010
        %v1197 = vpop.f32.mrb[0].mxu0
        %v1198 = vadd.f32 %v967, %v1197
        %v1199 = vpop.f32.mrb[0].mxu0
        %1200 = vmatprep.mubr.f32.mxu0 0.0
        %1201 = vmatmul.mubr.f32.gmra.mrb[0].mxu0 %v1013
        %v1202 = vpop.f32.mrb[0].mxu0
        %v1203 = vadd.f32 %v967, %v1202
        %v1204 = vpop.f32.mrb[0].mxu0
        %1205 = vmatprep.mubr.f32.mxu0 0.0
        %1206 = vmatmul.mubr.f32.gmra.mrb[0].mxu0 %v1016
        %v1207 = vpop.f32.mrb[0].mxu0
        %v1208 = vadd.f32 %v967, %v1207
        %v1209 = vpop.f32.mrb[0].mxu0
        %1210 = vmatprep.mubr.f32.mxu0 0.0
        %1211 = vmatmul.mubr.f32.gmra.mrb[0].mxu0 %v1019
        %v1212 = vpop.f32.mrb[0].mxu0
        %v1213 = vadd.f32 %v967, %v1212
        %v1214 = vpop.f32.mrb[0].mxu0
        %1215 = vmatprep.mubr.f32.mxu0 0.0
        %1216 = vmatmul.mubr.f32.gmra.mrb[0].mxu0 %v1022
        %v1217 = vpop.f32.mrb[0].mxu0
        %v1218 = vadd.f32 %v967, %v1217
        %v1219 = vpop.f32.mrb[0].mxu0
        %1220 = vmatprep.mubr.f32.mxu0 0.0
        %1221 = vmatmul.mubr.f32.gmra.mrb[0].mxu0 %v1025
        %v1222 = vpop.f32.mrb[0].mxu0
        %v1223 = vadd.f32 %v967, %v1222
        %v1224 = vpop.f32.mrb[0].mxu0
        %1225 = vmatprep.mubr.f32.mxu0 0.0
        %1226 = vmatmul.mubr.f32.gmra.mrb[0].mxu0 %v1028
        %v1227 = vpop.f32.mrb[0].mxu0
        %v1228 = vadd.f32 %v967, %v1227
        %v1229 = vpop.f32.mrb[0].mxu0
        %1230 = vmatprep.mubr.f32.mxu0 0.0
        %1231 = vmatmul.mubr.f32.gmra.mrb[0].mxu0 %v1031
        %v1232 = vpop.f32.mrb[0].mxu0
        %v1233 = vadd.f32 %v967, %v1232
        %v1234 = vpop.f32.mrb[0].mxu0
        %1235 = vmatprep.mubr.f32.mxu0 0.0
        %1236 = vmatmul.mubr.f32.gmra.mrb[0].mxu0 %v1034
        %v1237 = vpop.f32.mrb[0].mxu0
        %v1238 = vadd.f32 %v967, %v1237
        %v1239 = vpop.f32.mrb[0].mxu0
        %1240 = vmatprep.mubr.f32.mxu0 0.0
        %1241 = vmatmul.mubr.f32.gmra.mrb[0].mxu0 %v1037
        %v1242 = vpop.f32.mrb[0].mxu0
        %v1243 = vadd.f32 %v967, %v1242
        %v1244 = vpop.f32.mrb[0].mxu0
        %1245 = vmatprep.mubr.f32.mxu0 0.0
        %1246 = vmatmul.mubr.f32.gmra.mrb[0].mxu0 %v1040
        %v1247 = vpop.f32.mrb[0].mxu0
        %v1248 = vadd.f32 %v967, %v1247
        %v1249 = vpop.f32.mrb[0].mxu0
        %1250 = vmatprep.mubr.f32.mxu0 0.0
        %1251 = vmatmul.mubr.f32.gmra.mrb[0].mxu0 %v1043
        %v1252 = vpop.f32.mrb[0].mxu0
        %v1253 = vadd.f32 %v967, %v1252
        %v1254 = vpop.f32.mrb[0].mxu0
        %1255 = vmatprep.mubr.f32.mxu0 0.0
        %1256 = vmatmul.mubr.f32.gmra.mrb[0].mxu0 %v1046
        %v1257 = vpop.f32.mrb[0].mxu0
        %v1258 = vadd.f32 %v967, %v1257
        %v1259 = vpop.f32.mrb[0].mxu0
        %1260 = vmatprep.mubr.f32.mxu0 0.0
        %1261 = vmatmul.mubr.f32.gmra.mrb[0].mxu0 %v1049
        %v1262 = vpop.f32.mrb[0].mxu0
        %v1263 = vadd.f32 %v967, %v1262
        %v1264 = vpop.f32.mrb[0].mxu0
        %1265 = vmatprep.mubr.f32.mxu0 0.0
        %1266 = vmatmul.mubr.f32.gmra.mrb[0].mxu0 %v1052
        %v1267 = vpop.f32.mrb[0].mxu0
        %v1268 = vadd.f32 %v967, %v1267
        %v1269 = vpop.f32.mrb[0].mxu0
        %1270 = vmatprep.mubr.f32.mxu0 0.0
        %1271 = vmatmul.mubr.f32.gmra.mrb[0].mxu0 %v1055
        %v1272 = vpop.f32.mrb[0].mxu0
        %v1273 = vadd.f32 %v967, %v1272
        %v1274 = vpop.f32.mrb[0].mxu0
        %1275 = vmatprep.mubr.f32.mxu0 0.0
        %1276 = vmatmul.mubr.f32.gmra.mrb[0].mxu0 %v1058
        %v1277 = vpop.f32.mrb[0].mxu0
        %v1278 = vadd.f32 %v967, %v1277
        %v1279 = vpop.f32.mrb[0].mxu0
        %1280 = vmatprep.mubr.f32.mxu0 0.0
        %1281 = vmatmul.mubr.f32.gmra.mrb[0].mxu0 %v1061
        %v1282 = vpop.f32.mrb[0].mxu0
        %v1283 = vadd.f32 %v967, %v1282
        %v1284 = vpop.f32.mrb[0].mxu0
        %1285 = vmatprep.mubr.f32.mxu0 0.0
        %1286 = vmatmul.mubr.f32.gmra.mrb[0].mxu0 %v1064
        %v1287 = vpop.f32.mrb[0].mxu0
        %v1288 = vadd.f32 %v967, %v1287
        %v1289 = vpop.f32.mrb[0].mxu0
        %1290 = vdwg.mxu0
        %v1291 = vmax.f32 %v1133, 0.0
        %v1292 = vmax.f32 %v1138, 0.0
        %v1293 = vmax.f32 %v1143, 0.0
        %v1294 = vmax.f32 %v1148, 0.0
        %v1295 = vmax.f32 %v1153, 0.0
        %v1296 = vmax.f32 %v1158, 0.0
        %v1297 = vmax.f32 %v1163, 0.0
        %v1298 = vmax.f32 %v1168, 0.0
        %v1299 = vmax.f32 %v1173, 0.0
        %v1300 = vmax.f32 %v1178, 0.0
        %v1301 = vmax.f32 %v1183, 0.0
        %v1302 = vmax.f32 %v1188, 0.0
        %v1303 = vmax.f32 %v1193, 0.0
        %v1304 = vmax.f32 %v1198, 0.0
        %v1305 = vmax.f32 %v1203, 0.0
        %v1306 = vmax.f32 %v1208, 0.0
        %v1307 = vmax.f32 %v1213, 0.0
        %v1308 = vmax.f32 %v1218, 0.0
        %v1309 = vmax.f32 %v1223, 0.0
        %v1310 = vmax.f32 %v1228, 0.0
        %v1311 = vmax.f32 %v1233, 0.0
        %v1312 = vmax.f32 %v1238, 0.0
        %v1313 = vmax.f32 %v1243, 0.0
        %v1314 = vmax.f32 %v1248, 0.0
        %v1315 = vmax.f32 %v1253, 0.0
        %v1316 = vmax.f32 %v1258, 0.0
        %v1317 = vmax.f32 %v1263, 0.0
        %v1318 = vmax.f32 %v1268, 0.0
        %v1319 = vmax.f32 %v1273, 0.0
        %v1320 = vmax.f32 %v1278, 0.0
        %v1321 = vmax.f32 %v1283, 0.0
        %v1322 = vmax.f32 %v1288, 0.0
        %1323 = vst [vmem:[%s272] sm:$0xff] %v1291
        %1324 = vst [vmem:[%s272 + $0x8] sm:$0xff] %v1292
        %1325 = vst [vmem:[%s272 + $0x10] sm:$0xff] %v1293
        %1326 = vst [vmem:[%s272 + $0x18] sm:$0xff] %v1294
        %1327 = vst [vmem:[%s272 + $0x20] sm:$0xff] %v1295
        %1328 = vst [vmem:[%s272 + $0x28] sm:$0xff] %v1296
        %1329 = vst [vmem:[%s272 + $0x30] sm:$0xff] %v1297
        %1330 = vst [vmem:[%s272 + $0x38] sm:$0xff] %v1298
        %1331 = vst [vmem:[%s272 + $0x40] sm:$0xff] %v1299
        %1332 = vst [vmem:[%s272 + $0x48] sm:$0xff] %v1300
        %1333 = vst [vmem:[%s272 + $0x50] sm:$0xff] %v1301
        %1334 = vst [vmem:[%s272 + $0x58] sm:$0xff] %v1302
        %1335 = vst [vmem:[%s272 + $0x60] sm:$0xff] %v1303
        %1336 = vst [vmem:[%s272 + $0x68] sm:$0xff] %v1304
        %1337 = vst [vmem:[%s272 + $0x70] sm:$0xff] %v1305
        %1338 = vst [vmem:[%s272 + $0x78] sm:$0xff] %v1306
        %1339 = vst [vmem:[%s272 + $0x80] sm:$0xff] %v1307
        %1340 = vst [vmem:[%s272 + $0x88] sm:$0xff] %v1308
        %1341 = vst [vmem:[%s272 + $0x90] sm:$0xff] %v1309
        %1342 = vst [vmem:[%s272 + $0x98] sm:$0xff] %v1310
        %1343 = vst [vmem:[%s272 + $0xa0] sm:$0xff] %v1311
        %1344 = vst [vmem:[%s272 + $0xa8] sm:$0xff] %v1312
        %1345 = vst [vmem:[%s272 + $0xb0] sm:$0xff] %v1313
        %1346 = vst [vmem:[%s272 + $0xb8] sm:$0xff] %v1314
        %1347 = vst [vmem:[%s272 + $0xc0] sm:$0xff] %v1315
        %1348 = vst [vmem:[%s272 + $0xc8] sm:$0xff] %v1316
        %1349 = vst [vmem:[%s272 + $0xd0] sm:$0xff] %v1317
        %1350 = vst [vmem:[%s272 + $0xd8] sm:$0xff] %v1318
        %1351 = vst [vmem:[%s272 + $0xe0] sm:$0xff] %v1319
        %1352 = vst [vmem:[%s272 + $0xe8] sm:$0xff] %v1320
        %1353 = vst [vmem:[%s272 + $0xf0] sm:$0xff] %v1321
        %1354 = vst [vmem:[%s272 + $0xf8] sm:$0xff] %v1322
        %s1355 = sand.u32 %s181, 1
        %s1356 = scalar_lea.sflag [#allocation3], %s1355
        %s1357 = sand.u32 %s181, 1
        %s1358 = smul.addr %s1357, 256
        %s1359 = scalar_lea.vmem [#allocation2], %s1358
        // Predicated region
        $region49: #{tpu_custom_call.1} parent=47 // pred_check
          %p1360 = pneg %p191
        $region50: #{tpu_custom_call.1} parent=47 // pred_check_branch
          %1362 = sbr.rel (%p1360) target = $region52
        $region51: #{tpu_custom_call.1} parent=47 // pred_region
          %s1363 = smul.u32 32, %s21
          %s1365 = ssub.s32 4096, 4096
          %1366 = vsyncadd %s1356, %s1365
          %s1367 = smul.addr %s1363, 128
          %s1368 = scalar_lea.hbm %s7, %s1367
          %s1369 = sshll.u32 %s1359, 4
          %s1370 = int_to_ptr.vmem [resolvable:$true] %s1369
          %1375 = dma.vmem_to_hbm [thread:$0]  %s1370, 4096, %s1368, %s1356, 128, 128, 8
        $region52: #{tpu_custom_call.1} parent=47 // pred_fallthru
          _
      $region48: #{tpu_custom_call.1} parent=5 // pred_fallthru
        _
      %p1376 = scmp.le.s32.totalorder 2, %s16
      // Predicated region
      $region53: #{tpu_custom_call.1} parent=5 // pred_check
        %p1377 = pneg %p1376
      $region54: #{tpu_custom_call.1} parent=5 // pred_check_branch
        %1379 = sbr.rel (%p1377) target = $region56
      $region55: #{tpu_custom_call.1} parent=5 // pred_region
        %s1380 = ssub.s32 %s16, 2
        // Predicated region
        $region57: #{tpu_custom_call.1} parent=55 // pred_check
          %p1381 = pneg %p197
        $region58: #{tpu_custom_call.1} parent=55 // pred_check_branch
          %1383 = sbr.rel (%p1381) target = $region60
        $region59: #{tpu_custom_call.1} parent=55 // pred_region
          %s1384 = sand.u32 %s182, 1
          %s1385 = scalar_lea.sflag [#allocation3], %s1384
          %s1386 = sand.u32 %s182, 1
          %s1387 = smul.addr %s1386, 256
          %s1388 = scalar_lea.vmem [#allocation2], %s1387
          %1389 = dma.done %s1385, 4096
        $region60: #{tpu_custom_call.1} parent=55 // pred_fallthru
          _
      $region56: #{tpu_custom_call.1} parent=5 // pred_fallthru
        _
    $region6: #{tpu_custom_call.1} parent=1 // loop_footer
      %s20 = sadd.s32 1, %s16
    $region7: #{tpu_custom_call.1} parent=1 // loop_footer_branch
      %15 = sbr.rel target = $region3
    $region8: #{tpu_custom_call.1} parent=1 // loop_exit
      _
    %1390 = vsyncpa [#allocation3], 1
    %s1391 = scalar_lea.sflag [#allocation3], 1
    %1392 = vsyncpa %s1391, 1

</llo_original>
